<compile_context>
chip_gen: v6e
topology: v6e:2x2x1
jax: 0.10.0
libtpu: 0.0.40
codegen_flags: <defaults>
</compile_context>

<pallas_src>
import functools

import jax
import jax.numpy as jnp
from jax.experimental import pallas as pl
from jax.experimental.pallas import tpu as pltpu


def _skew_kernel(x_ref, w1t_ref, w2t_ref, w3t_ref, o_ref, *, mx_dtype):
    # x_ref: (n, n) f32 block for one batch instance.
    # w*t_ref: (n, n) pre-transposed weights (already W.T), possibly bf16.
    x = x_ref[...]
    h1 = jnp.tanh(
        jnp.dot(x.astype(mx_dtype), w1t_ref[...], preferred_element_type=jnp.float32)
    )
    h2 = jnp.tanh(
        jnp.dot(h1.astype(mx_dtype), w2t_ref[...], preferred_element_type=jnp.float32)
    )
    y = jnp.dot(h2.astype(mx_dtype), w3t_ref[...], preferred_element_type=jnp.float32)
    # Single XLU transpose + VPU subtract; result is exactly skew-symmetric.
    o_ref[...] = (y - y.T).astype(o_ref.dtype)


def skew_forward(x, w1, w2, w3, *, use_bf16=True):
    """Computes Skew.forward(x) for x of shape (..., n, n)."""
    w1 = jnp.asarray(w1, jnp.float32)
    w2 = jnp.asarray(w2, jnp.float32)
    w3 = jnp.asarray(w3, jnp.float32)
    x = jnp.asarray(x, jnp.float32)

    n = w1.shape[0]
    assert w1.shape == (n, n) and w2.shape == (n, n) and w3.shape == (n, n)
    assert x.shape[-2:] == (n, n), f"expected trailing dims ({n},{n}), got {x.shape}"

    orig_shape = x.shape
    xb = x.reshape((-1, n, n))
    batch = xb.shape[0]

    mx_dtype = jnp.bfloat16 if use_bf16 else jnp.float32
    # Pre-transpose once in the wrapper: Linear(X) == X @ W.T, so ship W.T directly
    # and avoid three in-kernel cross-lane transposes. Cast weights for the MXU here
    # too (halves their HBM->VMEM traffic).
    w1t = w1.T.astype(mx_dtype)
    w2t = w2.T.astype(mx_dtype)
    w3t = w3.T.astype(mx_dtype)

    # Rough per-step VMEM: double-buffered x/out blocks + 3 resident weights +
    # f32 intermediates (h1, h2, y, y.T, casts). Clamp to a sane range.
    bytes_f32 = n * n * 4
    bytes_w = n * n * (2 if use_bf16 else 4)
    vmem_est = 4 * bytes_f32 + 6 * bytes_w + 8 * bytes_f32
    vmem_limit = int(min(max(2 * vmem_est, 16 * 1024 * 1024), 48 * 1024 * 1024))

    kernel = functools.partial(_skew_kernel, mx_dtype=mx_dtype)

    out = pl.pallas_call(
        kernel,
        out_shape=jax.ShapeDtypeStruct((batch, n, n), jnp.float32),
        grid_spec=pltpu.PrefetchScalarGridSpec(
            num_scalar_prefetch=0,
            grid=(batch,),
            in_specs=[
                pl.BlockSpec((None, n, n), lambda b: (b, 0, 0)),  # x (squeezed batch)
                pl.BlockSpec((n, n), lambda b: (0, 0)),           # W1.T (resident)
                pl.BlockSpec((n, n), lambda b: (0, 0)),           # W2.T (resident)
                pl.BlockSpec((n, n), lambda b: (0, 0)),           # W3.T (resident)
            ],
            out_specs=pl.BlockSpec((None, n, n), lambda b: (b, 0, 0)),
        ),
        compiler_params=pltpu.CompilerParams(
            dimension_semantics=("parallel",),   # shards batch across v7x's 2 TCs
            vmem_limit_bytes=vmem_limit,
        ),
    )(xb, w1t, w2t, w3t)

    return out.reshape(orig_shape)


def skew_reference(x, w1, w2, w3):
    h = jnp.tanh(x @ w1.T)
    h = jnp.tanh(h @ w2.T)
    y = h @ w3.T
    return y - jnp.swapaxes(y, -1, -2)


if __name__ == "__main__":
    n = 32      # Skew(n, device) with a small n
    batch = 4   # a few independent Skew inputs packed into one call

    key = jax.random.PRNGKey(0)
    kx, k1, k2, k3 = jax.random.split(key, 4)

    # Deterministic init (scale mimics nn.Linear's U(-1/sqrt(n), 1/sqrt(n))).
    bound = 1.0 / jnp.sqrt(jnp.float32(n))
    x = jax.random.normal(kx, (batch, n, n), dtype=jnp.float32)
    w1 = jax.random.uniform(k1, (n, n), minval=-bound, maxval=bound, dtype=jnp.float32)
    w2 = jax.random.uniform(k2, (n, n), minval=-bound, maxval=bound, dtype=jnp.float32)
    w3 = jax.random.uniform(k3, (n, n), minval=-bound, maxval=bound, dtype=jnp.float32)

    out = jax.block_until_ready(skew_forward(x, w1, w2, w3))
    ref = jax.block_until_ready(skew_reference(x, w1, w2, w3))

    assert out.shape == x.shape
    # bf16 MXU inputs with f32 accumulation -> loosened tolerance vs the f32 reference.
    assert jnp.allclose(out, ref, atol=2e-2, rtol=2e-2), "mismatch vs f32 reference"
    # Skew-symmetry is exact by construction (same y used for both terms).
    assert jnp.allclose(out, -jnp.swapaxes(out, -1, -2), atol=1e-6)

    print("KERNEL_OK")
</pallas_src>

<mosaic_0001>
module attributes {stable_mosaic.version = 11 : i64} {
  func.func @_skew_kernel(%arg0: i32, %arg1: memref<1x32x32xf32, #tpu.memory_space<vmem>>, %arg2: memref<32x32xbf16, #tpu.memory_space<vmem>>, %arg3: memref<32x32xbf16, #tpu.memory_space<vmem>>, %arg4: memref<32x32xbf16, #tpu.memory_space<vmem>>, %arg5: memref<1x32x32xf32, #tpu.memory_space<vmem>>) attributes {dimension_semantics = [#tpu.dimension_semantics<parallel>], iteration_bounds = array<i64: 4>, scalar_prefetch = 0 : i64, scratch_operands = 0 : i64, tpu.core_type = #tpu.core_type<tc>, window_params = [{transform_indices = @transform_0, window_bounds = array<i64: 1, 32, 32>}, {pipeline_mode = #tpu.pipeline_mode<synchronous>, transform_indices = @transform_1, window_bounds = array<i64: 32, 32>}, {pipeline_mode = #tpu.pipeline_mode<synchronous>, transform_indices = @transform_2, window_bounds = array<i64: 32, 32>}, {pipeline_mode = #tpu.pipeline_mode<synchronous>, transform_indices = @transform_3, window_bounds = array<i64: 32, 32>}, {transform_indices = @transform_4, window_bounds = array<i64: 1, 32, 32>}]} {
    %c0 = arith.constant 0 : index
    %c0_0 = arith.constant 0 : index
    %c0_1 = arith.constant 0 : index
    %0 = vector.load %arg1[%c0, %c0_0, %c0_1] : memref<1x32x32xf32, #tpu.memory_space<vmem>>, vector<1x32x32xf32>
    %1 = vector.shape_cast %0 : vector<1x32x32xf32> to vector<32x32xf32>
    %2 = arith.truncf %1 : vector<32x32xf32> to vector<32x32xbf16>
    %c0_2 = arith.constant 0 : index
    %c0_3 = arith.constant 0 : index
    %3 = vector.load %arg2[%c0_2, %c0_3] : memref<32x32xbf16, #tpu.memory_space<vmem>>, vector<32x32xbf16>
    %cst = arith.constant dense<0.000000e+00> : vector<32x32xf32>
    %4 = tpu.matmul %2, %3, %cst {dimension_numbers = #tpu.dot_dimension_numbers<[1], [0], [0], [1], [0, 0, 1, 1], [], []>} : vector<32x32xbf16>, vector<32x32xbf16>, vector<32x32xf32> -> vector<32x32xf32>
    %5 = math.tanh %4 : vector<32x32xf32>
    %6 = arith.truncf %5 : vector<32x32xf32> to vector<32x32xbf16>
    %c0_4 = arith.constant 0 : index
    %c0_5 = arith.constant 0 : index
    %7 = vector.load %arg3[%c0_4, %c0_5] : memref<32x32xbf16, #tpu.memory_space<vmem>>, vector<32x32xbf16>
    %cst_6 = arith.constant dense<0.000000e+00> : vector<32x32xf32>
    %8 = tpu.matmul %6, %7, %cst_6 {dimension_numbers = #tpu.dot_dimension_numbers<[1], [0], [0], [1], [0, 0, 1, 1], [], []>} : vector<32x32xbf16>, vector<32x32xbf16>, vector<32x32xf32> -> vector<32x32xf32>
    %9 = math.tanh %8 : vector<32x32xf32>
    %10 = arith.truncf %9 : vector<32x32xf32> to vector<32x32xbf16>
    %c0_7 = arith.constant 0 : index
    %c0_8 = arith.constant 0 : index
    %11 = vector.load %arg4[%c0_7, %c0_8] : memref<32x32xbf16, #tpu.memory_space<vmem>>, vector<32x32xbf16>
    %cst_9 = arith.constant dense<0.000000e+00> : vector<32x32xf32>
    %12 = tpu.matmul %10, %11, %cst_9 {dimension_numbers = #tpu.dot_dimension_numbers<[1], [0], [0], [1], [0, 0, 1, 1], [], []>} : vector<32x32xbf16>, vector<32x32xbf16>, vector<32x32xf32> -> vector<32x32xf32>
    %13 = tpu.transpose %12, [1, 0] : vector<32x32xf32> -> vector<32x32xf32>
    %14 = arith.subf %12, %13 : vector<32x32xf32>
    %c0_10 = arith.constant 0 : index
    %c0_11 = arith.constant 0 : index
    %c0_12 = arith.constant 0 : index
    %15 = vector.load %arg5[%c0_10, %c0_11, %c0_12] : memref<1x32x32xf32, #tpu.memory_space<vmem>>, vector<1x32x32xf32>
    %16 = vector.shape_cast %15 : vector<1x32x32xf32> to vector<32x32xf32>
    %17 = vector.shape_cast %14 : vector<32x32xf32> to vector<1x32x32xf32>
    tpu.vector_store %arg5[%c0_10, %c0_11, %c0_12], %17 {strides = array<i32>} : memref<1x32x32xf32, #tpu.memory_space<vmem>>, vector<1x32x32xf32>,
    return
  }
  func.func @transform_0(%arg0: i32) -> (i32, i32, i32) {
    %c0_i32 = arith.constant 0 : i32
    %c0_i32_0 = arith.constant 0 : i32
    %c0_i32_1 = arith.constant 0 : i32
    return %arg0, %c0_i32, %c0_i32_0 : i32, i32, i32
  }
  func.func @transform_1(%arg0: i32) -> (i32, i32) {
    %c0_i32 = arith.constant 0 : i32
    %c0_i32_0 = arith.constant 0 : i32
    %c0_i32_1 = arith.constant 0 : i32
    return %c0_i32, %c0_i32_0 : i32, i32
  }
  func.func @transform_2(%arg0: i32) -> (i32, i32) {
    %c0_i32 = arith.constant 0 : i32
    %c0_i32_0 = arith.constant 0 : i32
    %c0_i32_1 = arith.constant 0 : i32
    return %c0_i32, %c0_i32_0 : i32, i32
  }
  func.func @transform_3(%arg0: i32) -> (i32, i32) {
    %c0_i32 = arith.constant 0 : i32
    %c0_i32_0 = arith.constant 0 : i32
    %c0_i32_1 = arith.constant 0 : i32
    return %c0_i32, %c0_i32_0 : i32, i32
  }
  func.func @transform_4(%arg0: i32) -> (i32, i32, i32) {
    %c0_i32 = arith.constant 0 : i32
    %c0_i32_0 = arith.constant 0 : i32
    %c0_i32_1 = arith.constant 0 : i32
    return %arg0, %c0_i32, %c0_i32_0 : i32, i32, i32
  }
}

</mosaic_0001>

<llo_original>
// kernel: tpu_custom_call.1
$region0: #{tpu_custom_call.1}
  #allocation0 [shape = 'u32[]', space=smem, size = 0x4, offset = 0x4, fixed_abs, tag = 'smem constant byte address 0x4 - core index']
  #allocation1 [shape = 'u32[144,128]{1,0:T(1,128)}', space=vmem, size = 0x12000, scoped, tag = 'internal scratch']
  %s0 = inlined_call_operand.hbm [shape: f32[4,32,32], index: 0, kind: input, shape index: {}]
  %s1 = inlined_call_operand.hbm [shape: bf16[32,32], index: 1, kind: input, shape index: {}]
  %s2 = inlined_call_operand.hbm [shape: bf16[32,32], index: 2, kind: input, shape index: {}]
  %s3 = inlined_call_operand.hbm [shape: bf16[32,32], index: 3, kind: input, shape index: {}]
  %s4 = inlined_call_operand.hbm [shape: f32[4,32,32], index: 4, kind: output, shape index: {}]
  %s5 = sld [smem:[#allocation0]]
  $region65: #{tpu_custom_call.1} parent=0
    _
  %s7 = ssub.s32 1, %s5
  %s8 = scalar_select 0, %s7, %s5
  $region1: #{tpu_custom_call.1} parent=0
    #allocation2 [shape = 'u8[32768]{0}', space=vmem, size = 0x8000, scoped, tag = 'input window, operand 0']
    #allocation3 [shape = 's32[2]{0}', space=sflag, size = 0x8, scoped, tag = 'scoped memory for tpu_custom_call.1']
    #allocation4 [shape = 's32[2]{0}', space=sflag, size = 0x8, scoped, tag = 'scoped memory for tpu_custom_call.1']
    #allocation5 [shape = 'u8[8192]{0}', space=vmem, size = 0x2000, scoped, tag = 'input window, operand 1, single buffered']
    #allocation6 [shape = 's32[1]{0}', space=sflag, size = 0x4, scoped, tag = 'scoped memory for tpu_custom_call.1']
    #allocation7 [shape = 'u8[8192]{0}', space=vmem, size = 0x2000, scoped, tag = 'input window, operand 2, single buffered']
    #allocation8 [shape = 'u8[8192]{0}', space=vmem, size = 0x2000, scoped, tag = 'input window, operand 3, single buffered']
    #allocation9 [shape = 's32[1]{0}', space=sflag, size = 0x4, scoped, tag = 'scoped memory for tpu_custom_call.1']
    #allocation10 [shape = 'u8[32768]{0}', space=vmem, size = 0x8000, scoped, tag = 'output window, operand 0']
    %9 = vsyncpa [#allocation3], 0
    %s10 = scalar_lea.sflag [#allocation3], 1
    %11 = vsyncpa %s10, 0
    %12 = vsyncpa [#allocation6], 0
    %13 = vsyncpa [#allocation9], 0
    %14 = vsyncpa [#allocation4], 0
    %s15 = scalar_lea.sflag [#allocation4], 1
    %16 = vsyncpa %s15, 0
    loop: start=0, step=1, limit=6
    $region2: #{tpu_custom_call.1} parent=1 // loop_pre_header
      _
    $region3: #{tpu_custom_call.1} parent=1 // loop_header
      %s18 = sphi 0, %s22
      %p19 = scmp.ge.s32.totalorder %s18, 6
      %s28 = sphi 0, %s30
      %s31 = sphi 0, %s28
      %s32 = sphi 0, %s31
      %s48 = sphi 0, %s32
      %s52 = sphi 0, %s52
      %s54 = sphi 0, %s52
      %s55 = sphi 0, %s54
      %s69 = sphi 0, %s55
      %s73 = sphi 0, %s73
      %s75 = sphi 0, %s73
      %s76 = sphi 0, %s75
      %s90 = sphi 0, %s76
      %s94 = sphi 0, %s94
      %s96 = sphi 0, %s94
      %s97 = sphi 0, %s96
      %s111 = sphi 0, %s97
      %s117 = sphi 0, %s119
      %s120 = sphi 0, %s117
      %s121 = sphi 0, %s120
      %s137 = sphi 0, %s121
    $region4: #{tpu_custom_call.1} parent=1 // loop_header_branch
      %21 = sbr.rel (%p19) target = $region8
    $region5: #{tpu_custom_call.1} parent=1 // loop_body
      %s23 = ssub.s32 %s18, 1
      %s24 = ssub.s32 %s18, 2
      %s25 = sadd.s32 %s18, 1
      %s26 = ssub.s32 %s18, %s25
      %p27 = scmp.eq.s32.totalorder %s26, 0
      %s29 = sadd.s32 %s28, 1
      %s30 = scalar_select %p27, %s28, %s29
      %p33 = pneg %p27
      %p34 = scmp.eq.s32.totalorder %s18, 3
      %p35 = por %p33, %p34
      %p36 = scmp.ne.s32.totalorder %s28, %s31
      %p37 = scmp.eq.s32.totalorder %s18, 0
      %p38 = por %p36, %p37
      %p39 = scmp.ne.s32.totalorder %s28, %s31
      %p40 = scmp.eq.s32.totalorder %s23, 3
      %p41 = por %p39, %p40
      %p42 = scmp.ne.s32.totalorder %s31, %s32
      %p43 = scmp.eq.s32.totalorder %s23, 0
      %p44 = por %p42, %p43
      %p45 = scmp.ne.s32.totalorder %s31, %s32
      %p46 = scmp.eq.s32.totalorder %s24, 3
      %p47 = por %p45, %p46
      %p49 = scmp.ne.s32.totalorder %s32, %s48
      %p50 = scmp.eq.s32.totalorder %s24, 0
      %p51 = por %p49, %p50
      %s53 = sadd.s32 %s52, 1
      %p56 = scmp.eq.s32.totalorder %s18, 3
      %p57 = scmp.ne.s32.totalorder %s52, %s54
      %p58 = scmp.eq.s32.totalorder %s18, 0
      %p59 = por %p57, %p58
      %p60 = scmp.ne.s32.totalorder %s52, %s54
      %p61 = scmp.eq.s32.totalorder %s23, 3
      %p62 = por %p60, %p61
      %p63 = scmp.ne.s32.totalorder %s54, %s55
      %p64 = scmp.eq.s32.totalorder %s23, 0
      %p65 = por %p63, %p64
      %p66 = scmp.ne.s32.totalorder %s54, %s55
      %p67 = scmp.eq.s32.totalorder %s24, 3
      %p68 = por %p66, %p67
      %p70 = scmp.ne.s32.totalorder %s55, %s69
      %p71 = scmp.eq.s32.totalorder %s24, 0
      %p72 = por %p70, %p71
      %s74 = sadd.s32 %s73, 1
      %p77 = scmp.eq.s32.totalorder %s18, 3
      %p78 = scmp.ne.s32.totalorder %s73, %s75
      %p79 = scmp.eq.s32.totalorder %s18, 0
      %p80 = por %p78, %p79
      %p81 = scmp.ne.s32.totalorder %s73, %s75
      %p82 = scmp.eq.s32.totalorder %s23, 3
      %p83 = por %p81, %p82
      %p84 = scmp.ne.s32.totalorder %s75, %s76
      %p85 = scmp.eq.s32.totalorder %s23, 0
      %p86 = por %p84, %p85
      %p87 = scmp.ne.s32.totalorder %s75, %s76
      %p88 = scmp.eq.s32.totalorder %s24, 3
      %p89 = por %p87, %p88
      %p91 = scmp.ne.s32.totalorder %s76, %s90
      %p92 = scmp.eq.s32.totalorder %s24, 0
      %p93 = por %p91, %p92
      %s95 = sadd.s32 %s94, 1
      %p98 = scmp.eq.s32.totalorder %s18, 3
      %p99 = scmp.ne.s32.totalorder %s94, %s96
      %p100 = scmp.eq.s32.totalorder %s18, 0
      %p101 = por %p99, %p100
      %p102 = scmp.ne.s32.totalorder %s94, %s96
      %p103 = scmp.eq.s32.totalorder %s23, 3
      %p104 = por %p102, %p103
      %p105 = scmp.ne.s32.totalorder %s96, %s97
      %p106 = scmp.eq.s32.totalorder %s23, 0
      %p107 = por %p105, %p106
      %p108 = scmp.ne.s32.totalorder %s96, %s97
      %p109 = scmp.eq.s32.totalorder %s24, 3
      %p110 = por %p108, %p109
      %p112 = scmp.ne.s32.totalorder %s97, %s111
      %p113 = scmp.eq.s32.totalorder %s24, 0
      %p114 = por %p112, %p113
      %s115 = ssub.s32 %s18, %s25
      %p116 = scmp.eq.s32.totalorder %s115, 0
      %s118 = sadd.s32 %s117, 1
      %s119 = scalar_select %p116, %s117, %s118
      %p122 = pneg %p116
      %p123 = scmp.eq.s32.totalorder %s18, 3
      %p124 = por %p122, %p123
      %p125 = scmp.ne.s32.totalorder %s117, %s120
      %p126 = scmp.eq.s32.totalorder %s18, 0
      %p127 = por %p125, %p126
      %p128 = scmp.ne.s32.totalorder %s117, %s120
      %p129 = scmp.eq.s32.totalorder %s23, 3
      %p130 = por %p128, %p129
      %p131 = scmp.ne.s32.totalorder %s120, %s121
      %p132 = scmp.eq.s32.totalorder %s23, 0
      %p133 = por %p131, %p132
      %p134 = scmp.ne.s32.totalorder %s120, %s121
      %p135 = scmp.eq.s32.totalorder %s24, 3
      %p136 = por %p134, %p135
      %p138 = scmp.ne.s32.totalorder %s121, %s137
      %p139 = scmp.eq.s32.totalorder %s24, 0
      %p140 = por %p138, %p139
      %p141 = scmp.le.s32.totalorder 1, %s18
      %p142 = scmp.lt.s32.totalorder %s18, 5
      %p143 = pnand %p141, %p142
      %p144 = pneg %p143
      // Predicated region
      $region9: #{tpu_custom_call.1} parent=5 // pred_check
        _
      $region10: #{tpu_custom_call.1} parent=5 // pred_check_branch
        %146 = sbr.rel (%p143) target = $region12
      $region11: #{tpu_custom_call.1} parent=5 // pred_region
        %s147 = ssub.s32 %s18, 1
        // Predicated region
        $region13: #{tpu_custom_call.1} parent=11 // pred_check
          %p148 = pneg %p65
        $region14: #{tpu_custom_call.1} parent=11 // pred_check_branch
          %150 = sbr.rel (%p148) target = $region16
        $region15: #{tpu_custom_call.1} parent=11 // pred_region
          %s152 = ssub.s32 256, 256
          %153 = vsyncadd [#allocation6], %s152
          %s154 = sshll.u32 [#allocation5], 4
          %s155 = int_to_ptr.vmem [resolvable:$true] %s154
          %160 = dma.hbm_to_vmem [thread:$0]  %s1, 256, %s155, [#allocation6], 64, 64, 4
        $region16: #{tpu_custom_call.1} parent=11 // pred_fallthru
          _
        // Predicated region
        $region17: #{tpu_custom_call.1} parent=11 // pred_check
          %p161 = pneg %p86
        $region18: #{tpu_custom_call.1} parent=11 // pred_check_branch
          %163 = sbr.rel (%p161) target = $region20
        $region19: #{tpu_custom_call.1} parent=11 // pred_region
          %s165 = ssub.s32 256, 256
          %166 = vsyncadd [#allocation6], %s165
          %s167 = sshll.u32 [#allocation7], 4
          %s168 = int_to_ptr.vmem [resolvable:$true] %s167
          %173 = dma.hbm_to_vmem [thread:$0]  %s2, 256, %s168, [#allocation6], 64, 64, 4
        $region20: #{tpu_custom_call.1} parent=11 // pred_fallthru
          _
        // Predicated region
        $region21: #{tpu_custom_call.1} parent=11 // pred_check
          %p174 = pneg %p107
        $region22: #{tpu_custom_call.1} parent=11 // pred_check_branch
          %176 = sbr.rel (%p174) target = $region24
        $region23: #{tpu_custom_call.1} parent=11 // pred_region
          %s178 = ssub.s32 256, 256
          %179 = vsyncadd [#allocation9], %s178
          %s180 = sshll.u32 [#allocation8], 4
          %s181 = int_to_ptr.vmem [resolvable:$true] %s180
          %186 = dma.hbm_to_vmem [thread:$0]  %s3, 256, %s181, [#allocation9], 64, 64, 4
        $region24: #{tpu_custom_call.1} parent=11 // pred_fallthru
          _
      $region12: #{tpu_custom_call.1} parent=5 // pred_fallthru
        _
      %p187 = scmp.lt.s32.totalorder %s18, 4
      // Predicated region
      $region25: #{tpu_custom_call.1} parent=5 // pred_check
        %p188 = pneg %p187
      $region26: #{tpu_custom_call.1} parent=5 // pred_check_branch
        %190 = sbr.rel (%p188) target = $region28
      $region27: #{tpu_custom_call.1} parent=5 // pred_region
        // Predicated region
        $region29: #{tpu_custom_call.1} parent=27 // pred_check
          %p191 = pneg %p38
        $region30: #{tpu_custom_call.1} parent=27 // pred_check_branch
          %193 = sbr.rel (%p191) target = $region32
        $region31: #{tpu_custom_call.1} parent=27 // pred_region
          %s194 = sand.u32 %s28, 1
          %s195 = scalar_lea.sflag [#allocation3], %s194
          %s196 = sand.u32 %s28, 1
          %s197 = smul.addr %s196, 32
          %s198 = scalar_lea.vmem [#allocation2], %s197
          %s200 = ssub.s32 512, 512
          %201 = vsyncadd %s195, %s200
          %s202 = smul.addr %s18, 4
          %s203 = smul.addr %s202, 128
          %s204 = scalar_lea.hbm %s0, %s203
          %s205 = sshll.u32 %s198, 4
          %s206 = int_to_ptr.vmem [resolvable:$true] %s205
          %211 = dma.hbm_to_vmem [thread:$0]  %s204, 512, %s206, %s195, 128, 128, 8
        $region32: #{tpu_custom_call.1} parent=27 // pred_fallthru
          _
      $region28: #{tpu_custom_call.1} parent=5 // pred_fallthru
        _
      %p212 = scmp.le.s32.totalorder 1, %s18
      %p213 = scmp.lt.s32.totalorder %s18, 5
      %p214 = pnand %p212, %p213
      %p215 = pneg %p214
      // Predicated region
      $region33: #{tpu_custom_call.1} parent=5 // pred_check
        _
      $region34: #{tpu_custom_call.1} parent=5 // pred_check_branch
        %217 = sbr.rel (%p214) target = $region36
      $region35: #{tpu_custom_call.1} parent=5 // pred_region
        %s218 = ssub.s32 %s18, 1
        %s219 = sand.u32 %s31, 1
        %s220 = scalar_lea.sflag [#allocation3], %s219
        %s221 = sand.u32 %s31, 1
        %s222 = smul.addr %s221, 32
        %s223 = scalar_lea.vmem [#allocation2], %s222
        // Predicated region
        $region37: #{tpu_custom_call.1} parent=35 // pred_check
          %p224 = pneg %p44
        $region38: #{tpu_custom_call.1} parent=35 // pred_check_branch
          %226 = sbr.rel (%p224) target = $region40
        $region39: #{tpu_custom_call.1} parent=35 // pred_region
          %227 = dma.done %s220, 512
        $region40: #{tpu_custom_call.1} parent=35 // pred_fallthru
          _
        // Predicated region
        $region41: #{tpu_custom_call.1} parent=35 // pred_check
          %p228 = pneg %p65
        $region42: #{tpu_custom_call.1} parent=35 // pred_check_branch
          %230 = sbr.rel (%p228) target = $region44
        $region43: #{tpu_custom_call.1} parent=35 // pred_region
          %231 = dma.done [#allocation6], 256
        $region44: #{tpu_custom_call.1} parent=35 // pred_fallthru
          _
        // Predicated region
        $region45: #{tpu_custom_call.1} parent=35 // pred_check
          %p232 = pneg %p86
        $region46: #{tpu_custom_call.1} parent=35 // pred_check_branch
          %234 = sbr.rel (%p232) target = $region48
        $region47: #{tpu_custom_call.1} parent=35 // pred_region
          %235 = dma.done [#allocation6], 256
        $region48: #{tpu_custom_call.1} parent=35 // pred_fallthru
          _
        // Predicated region
        $region49: #{tpu_custom_call.1} parent=35 // pred_check
          %p236 = pneg %p107
        $region50: #{tpu_custom_call.1} parent=35 // pred_check_branch
          %238 = sbr.rel (%p236) target = $region52
        $region51: #{tpu_custom_call.1} parent=35 // pred_region
          %239 = dma.done [#allocation9], 256
        $region52: #{tpu_custom_call.1} parent=35 // pred_fallthru
          _
        %s240 = sand.u32 %s31, 1
        %s241 = scalar_lea.sflag [#allocation3], %s240
        %s242 = sand.u32 %s31, 1
        %s243 = smul.addr %s242, 32
        %s244 = scalar_lea.vmem [#allocation2], %s243
        %p245 = pneg %p44
        %p246 = pneg %p41
        %p247 = pneg %p65
        %p248 = pneg %p62
        %p249 = pneg %p86
        %p250 = pneg %p83
        %p251 = pneg %p107
        %p252 = pneg %p104
        %p253 = pneg %p133
        %p254 = pneg %p130
        %s255 = sand.u32 %s120, 1
        %s256 = scalar_lea.sflag [#allocation4], %s255
        %s257 = sand.u32 %s120, 1
        %s258 = smul.addr %s257, 32
        %s259 = scalar_lea.vmem [#allocation10], %s258
        %v261 = vld [vmem:[%s223] sm:$0xff]
        %v262 = vld [vmem:[%s223 + $0x8] sm:$0xff]
        %v263 = vld [vmem:[%s223 + $0x10] sm:$0xff]
        %v264 = vld [vmem:[%s223 + $0x18] sm:$0xff]
        %v265 = vpack.c.bf16 %v262, %v261
        %v266 = vpack.c.bf16 %v264, %v263
        %v267 = vld [vmem:[#allocation5] sm:$0xf]
        %v268 = vld [vmem:[#allocation5 + $0x4] sm:$0xf]
        %v269 = vld [vmem:[#allocation5 + $0x8] sm:$0xf]
        %v270 = vld [vmem:[#allocation5 + $0xc] sm:$0xf]
        %v275 = vunpack.c.l.b16 %v267
        %v276 = vunpack.c.l.b16 %v268
        %v277 = vunpack.c.l.b16 %v269
        %v278 = vunpack.c.l.b16 %v270
        %v279 = vpack.c.b16 %v276, %v275
        %v280 = vpack.c.b16 %v278, %v277
        %vm283 = vcmask 261120
        %v285 = vsel %vm283, %v265, 0
        %v288 = vsel %vm283, %v266, 0
        %290 = vmatprep.subr.bf16.mxu0 0
        %291 = vmatpush1.bf16.msra.mxu0 0
        %292 = vmatprep.subr.bf16.mxu0 0
        %293 = vmatpush1.bf16.msra.mxu0 0
        %294 = vmatprep.subr.bf16.mxu0 0
        %295 = vmatpush1.bf16.msra.mxu0 0
        %296 = vmatprep.subr.bf16.mxu0 0
        %297 = vmatpush1.bf16.msra.mxu0 0
        %298 = vmatprep.subr.bf16.mxu0 0
        %299 = vmatpush1.bf16.msra.mxu0 0
        %300 = vmatprep.subr.bf16.mxu0 0
        %301 = vmatpush1.bf16.msra.mxu0 0
        %302 = vmatprep.subr.bf16.mxu0 0
        %303 = vmatpush1.bf16.msra.mxu0 %v280
        %304 = vmatprep.subr.bf16.mxu0 0
        %305 = vmatpush1.bf16.msra.mxu0 %v279
        %306 = vmatprep.subr.bf16.mxu0 0
        %307 = vmatpush2.bf16.msra.mxu0 0
        %308 = vmatprep.subr.bf16.mxu0 0
        %309 = vmatpush2.bf16.msra.mxu0 0
        %310 = vmatprep.subr.bf16.mxu0 0
        %311 = vmatpush2.bf16.msra.mxu0 0
        %312 = vmatprep.subr.bf16.mxu0 0
        %313 = vmatpush2.bf16.msra.mxu0 0
        %314 = vmatprep.subr.bf16.mxu0 0
        %315 = vmatpush2.bf16.msra.mxu0 0
        %316 = vmatprep.subr.bf16.mxu0 0
        %317 = vmatpush2.bf16.msra.mxu0 0
        %318 = vmatprep.subr.bf16.mxu0 0
        %319 = vmatpush2.bf16.msra.mxu0 0
        %320 = vmatprep.subr.bf16.mxu0 0
        %321 = vmatpush2.bf16.msra.mxu0 0
        %322 = vmatprep.mubr.bf16.mxu0 0
        %323 = vmatmul.mubr.bf16.gmra.mxu0 %v285
        %v324 = vpop.f32.mrf.mxu0
        %v325 = vadd.f32 0.0, %v324
        %v326 = vpop.f32.mrf.mxu0
        %v327 = vpop.f32.mrf.mxu0
        %v328 = vadd.f32 0.0, %v327
        %v329 = vpop.f32.mrf.mxu0
        %330 = vmatprep.mubr.bf16.mxu0 0
        %331 = vmatmul.mubr.bf16.gmra.mxu0 %v288
        %v332 = vpop.f32.mrf.mxu0
        %v333 = vadd.f32 0.0, %v332
        %v334 = vpop.f32.mrf.mxu0
        %v335 = vpop.f32.mrf.mxu0
        %v336 = vadd.f32 0.0, %v335
        %v337 = vpop.f32.mrf.mxu0
        %338 = vdwg.mxu0
        %v339 = vtanh.pop %v325
        %v340 = vtanh.pop %v328
        %v341 = vtanh.pop %v333
        %v342 = vtanh.pop %v336
        %v343 = vpack.c.bf16 %v340, %v339
        %v344 = vpack.c.bf16 %v342, %v341
        %v345 = vld [vmem:[#allocation7] sm:$0xf]
        %v346 = vld [vmem:[#allocation7 + $0x4] sm:$0xf]
        %v347 = vld [vmem:[#allocation7 + $0x8] sm:$0xf]
        %v348 = vld [vmem:[#allocation7 + $0xc] sm:$0xf]
        %v353 = vunpack.c.l.b16 %v345
        %v354 = vunpack.c.l.b16 %v346
        %v355 = vunpack.c.l.b16 %v347
        %v356 = vunpack.c.l.b16 %v348
        %v357 = vpack.c.b16 %v354, %v353
        %v358 = vpack.c.b16 %v356, %v355
        %v362 = vsel %vm283, %v343, 0
        %v365 = vsel %vm283, %v344, 0
        %367 = vmatprep.subr.bf16.mxu0 0
        %368 = vmatpush1.bf16.msra.mxu0 0
        %369 = vmatprep.subr.bf16.mxu0 0
        %370 = vmatpush1.bf16.msra.mxu0 0
        %371 = vmatprep.subr.bf16.mxu0 0
        %372 = vmatpush1.bf16.msra.mxu0 0
        %373 = vmatprep.subr.bf16.mxu0 0
        %374 = vmatpush1.bf16.msra.mxu0 0
        %375 = vmatprep.subr.bf16.mxu0 0
        %376 = vmatpush1.bf16.msra.mxu0 0
        %377 = vmatprep.subr.bf16.mxu0 0
        %378 = vmatpush1.bf16.msra.mxu0 0
        %379 = vmatprep.subr.bf16.mxu0 0
        %380 = vmatpush1.bf16.msra.mxu0 %v358
        %381 = vmatprep.subr.bf16.mxu0 0
        %382 = vmatpush1.bf16.msra.mxu0 %v357
        %383 = vmatprep.subr.bf16.mxu0 0
        %384 = vmatpush2.bf16.msra.mxu0 0
        %385 = vmatprep.subr.bf16.mxu0 0
        %386 = vmatpush2.bf16.msra.mxu0 0
        %387 = vmatprep.subr.bf16.mxu0 0
        %388 = vmatpush2.bf16.msra.mxu0 0
        %389 = vmatprep.subr.bf16.mxu0 0
        %390 = vmatpush2.bf16.msra.mxu0 0
        %391 = vmatprep.subr.bf16.mxu0 0
        %392 = vmatpush2.bf16.msra.mxu0 0
        %393 = vmatprep.subr.bf16.mxu0 0
        %394 = vmatpush2.bf16.msra.mxu0 0
        %395 = vmatprep.subr.bf16.mxu0 0
        %396 = vmatpush2.bf16.msra.mxu0 0
        %397 = vmatprep.subr.bf16.mxu0 0
        %398 = vmatpush2.bf16.msra.mxu0 0
        %399 = vmatprep.mubr.bf16.mxu0 0
        %400 = vmatmul.mubr.bf16.gmra.mxu0 %v362
        %v401 = vpop.f32.mrf.mxu0
        %v402 = vadd.f32 0.0, %v401
        %v403 = vpop.f32.mrf.mxu0
        %v404 = vpop.f32.mrf.mxu0
        %v405 = vadd.f32 0.0, %v404
        %v406 = vpop.f32.mrf.mxu0
        %407 = vmatprep.mubr.bf16.mxu0 0
        %408 = vmatmul.mubr.bf16.gmra.mxu0 %v365
        %v409 = vpop.f32.mrf.mxu0
        %v410 = vadd.f32 0.0, %v409
        %v411 = vpop.f32.mrf.mxu0
        %v412 = vpop.f32.mrf.mxu0
        %v413 = vadd.f32 0.0, %v412
        %v414 = vpop.f32.mrf.mxu0
        %415 = vdwg.mxu0
        %v416 = vtanh.pop %v402
        %v417 = vtanh.pop %v405
        %v418 = vtanh.pop %v410
        %v419 = vtanh.pop %v413
        %v420 = vpack.c.bf16 %v417, %v416
        %v421 = vpack.c.bf16 %v419, %v418
        %v422 = vld [vmem:[#allocation8] sm:$0xf]
        %v423 = vld [vmem:[#allocation8 + $0x4] sm:$0xf]
        %v424 = vld [vmem:[#allocation8 + $0x8] sm:$0xf]
        %v425 = vld [vmem:[#allocation8 + $0xc] sm:$0xf]
        %v430 = vunpack.c.l.b16 %v422
        %v431 = vunpack.c.l.b16 %v423
        %v432 = vunpack.c.l.b16 %v424
        %v433 = vunpack.c.l.b16 %v425
        %v434 = vpack.c.b16 %v431, %v430
        %v435 = vpack.c.b16 %v433, %v432
        %v439 = vsel %vm283, %v420, 0
        %v442 = vsel %vm283, %v421, 0
        %444 = vmatprep.subr.bf16.mxu0 0
        %445 = vmatpush1.bf16.msra.mxu0 0
        %446 = vmatprep.subr.bf16.mxu0 0
        %447 = vmatpush1.bf16.msra.mxu0 0
        %448 = vmatprep.subr.bf16.mxu0 0
        %449 = vmatpush1.bf16.msra.mxu0 0
        %450 = vmatprep.subr.bf16.mxu0 0
        %451 = vmatpush1.bf16.msra.mxu0 0
        %452 = vmatprep.subr.bf16.mxu0 0
        %453 = vmatpush1.bf16.msra.mxu0 0
        %454 = vmatprep.subr.bf16.mxu0 0
        %455 = vmatpush1.bf16.msra.mxu0 0
        %456 = vmatprep.subr.bf16.mxu0 0
        %457 = vmatpush1.bf16.msra.mxu0 %v435
        %458 = vmatprep.subr.bf16.mxu0 0
        %459 = vmatpush1.bf16.msra.mxu0 %v434
        %460 = vmatprep.subr.bf16.mxu0 0
        %461 = vmatpush2.bf16.msra.mxu0 0
        %462 = vmatprep.subr.bf16.mxu0 0
        %463 = vmatpush2.bf16.msra.mxu0 0
        %464 = vmatprep.subr.bf16.mxu0 0
        %465 = vmatpush2.bf16.msra.mxu0 0
        %466 = vmatprep.subr.bf16.mxu0 0
        %467 = vmatpush2.bf16.msra.mxu0 0
        %468 = vmatprep.subr.bf16.mxu0 0
        %469 = vmatpush2.bf16.msra.mxu0 0
        %470 = vmatprep.subr.bf16.mxu0 0
        %471 = vmatpush2.bf16.msra.mxu0 0
        %472 = vmatprep.subr.bf16.mxu0 0
        %473 = vmatpush2.bf16.msra.mxu0 0
        %474 = vmatprep.subr.bf16.mxu0 0
        %475 = vmatpush2.bf16.msra.mxu0 0
        %476 = vmatprep.mubr.bf16.mxu0 0
        %477 = vmatmul.mubr.bf16.gmra.mxu0 %v439
        %v478 = vpop.f32.mrf.mxu0
        %v479 = vadd.f32 0.0, %v478
        %v480 = vpop.f32.mrf.mxu0
        %v481 = vpop.f32.mrf.mxu0
        %v482 = vadd.f32 0.0, %v481
        %v483 = vpop.f32.mrf.mxu0
        %484 = vmatprep.mubr.bf16.mxu0 0
        %485 = vmatmul.mubr.bf16.gmra.mxu0 %v442
        %v486 = vpop.f32.mrf.mxu0
        %v487 = vadd.f32 0.0, %v486
        %v488 = vpop.f32.mrf.mxu0
        %v489 = vpop.f32.mrf.mxu0
        %v490 = vadd.f32 0.0, %v489
        %v491 = vpop.f32.mrf.mxu0
        %492 = vdwg.mxu0
        %493 = vxpose.xlu0.b32.start [1/16] %v479, 128
        %494 = vxpose.xlu0.b32.cont [2/16] %v482, 128
        %495 = vxpose.xlu0.b32.cont [3/16] %v487, 128
        %496 = vxpose.xlu0.b32.cont [4/16] %v490, 128
        %497 = vxpose.xlu0.b32.cont [5/16] 0.0, 128
        %498 = vxpose.xlu0.b32.cont [6/16] 0.0, 128
        %499 = vxpose.xlu0.b32.cont [7/16] 0.0, 128
        %500 = vxpose.xlu0.b32.cont [8/16] 0.0, 128
        %501 = vxpose.xlu0.b32.cont [9/16] 0.0, 128
        %502 = vxpose.xlu0.b32.cont [10/16] 0.0, 128
        %503 = vxpose.xlu0.b32.cont [11/16] 0.0, 128
        %504 = vxpose.xlu0.b32.cont [12/16] 0.0, 128
        %505 = vxpose.xlu0.b32.cont [13/16] 0.0, 128
        %506 = vxpose.xlu0.b32.cont [14/16] 0.0, 128
        %507 = vxpose.xlu0.b32.cont [15/16] 0.0, 128
        %508 = vxpose.xlu0.b32.end [16/16] 0.0, 128
        %v509 = vpop.trf.xlu0
        %v510 = vpop.trf.xlu0
        %v511 = vpop.trf.xlu0
        %v512 = vpop.trf.xlu0
        %v513 = vpop.trf.xlu0
        %v514 = vpop.trf.xlu0
        %v515 = vpop.trf.xlu0
        %v516 = vpop.trf.xlu0
        %v517 = vpop.trf.xlu0
        %v518 = vpop.trf.xlu0
        %v519 = vpop.trf.xlu0
        %v520 = vpop.trf.xlu0
        %v521 = vpop.trf.xlu0
        %v522 = vpop.trf.xlu0
        %v523 = vpop.trf.xlu0
        %v524 = vpop.trf.xlu0
        %v525 = vsub.f32 %v479, %v509
        %v526 = vsub.f32 %v482, %v510
        %v527 = vsub.f32 %v487, %v511
        %v528 = vsub.f32 %v490, %v512
        %529 = vst.msk [vmem:[%s259] sm:$0xff] %vm283, %v525
        %530 = vst.msk [vmem:[%s259 + $0x8] sm:$0xff] %vm283, %v526
        %531 = vst.msk [vmem:[%s259 + $0x10] sm:$0xff] %vm283, %v527
        %532 = vst.msk [vmem:[%s259 + $0x18] sm:$0xff] %vm283, %v528
        %s533 = sand.u32 %s120, 1
        %s534 = scalar_lea.sflag [#allocation4], %s533
        %s535 = sand.u32 %s120, 1
        %s536 = smul.addr %s535, 32
        %s537 = scalar_lea.vmem [#allocation10], %s536
        // Predicated region
        $region53: #{tpu_custom_call.1} parent=35 // pred_check
          %p538 = pneg %p130
        $region54: #{tpu_custom_call.1} parent=35 // pred_check_branch
          %540 = sbr.rel (%p538) target = $region56
        $region55: #{tpu_custom_call.1} parent=35 // pred_region
          %s542 = ssub.s32 512, 512
          %543 = vsyncadd %s534, %s542
          %s544 = smul.addr %s23, 4
          %s545 = smul.addr %s544, 128
          %s546 = scalar_lea.hbm %s4, %s545
          %s547 = sshll.u32 %s537, 4
          %s548 = int_to_ptr.vmem [resolvable:$true] %s547
          %553 = dma.vmem_to_hbm [thread:$0]  %s548, 512, %s546, %s534, 128, 128, 8
        $region56: #{tpu_custom_call.1} parent=35 // pred_fallthru
          _
      $region36: #{tpu_custom_call.1} parent=5 // pred_fallthru
        _
      %p554 = scmp.le.s32.totalorder 2, %s18
      // Predicated region
      $region57: #{tpu_custom_call.1} parent=5 // pred_check
        %p555 = pneg %p554
      $region58: #{tpu_custom_call.1} parent=5 // pred_check_branch
        %557 = sbr.rel (%p555) target = $region60
      $region59: #{tpu_custom_call.1} parent=5 // pred_region
        %s558 = ssub.s32 %s18, 2
        // Predicated region
        $region61: #{tpu_custom_call.1} parent=59 // pred_check
          %p559 = pneg %p136
        $region62: #{tpu_custom_call.1} parent=59 // pred_check_branch
          %561 = sbr.rel (%p559) target = $region64
        $region63: #{tpu_custom_call.1} parent=59 // pred_region
          %s562 = sand.u32 %s121, 1
          %s563 = scalar_lea.sflag [#allocation4], %s562
          %s564 = sand.u32 %s121, 1
          %s565 = smul.addr %s564, 32
          %s566 = scalar_lea.vmem [#allocation10], %s565
          %567 = dma.done %s563, 512
        $region64: #{tpu_custom_call.1} parent=59 // pred_fallthru
          _
      $region60: #{tpu_custom_call.1} parent=5 // pred_fallthru
        _
    $region6: #{tpu_custom_call.1} parent=1 // loop_footer
      %s22 = sadd.s32 1, %s18
    $region7: #{tpu_custom_call.1} parent=1 // loop_footer_branch
      %17 = sbr.rel target = $region3
    $region8: #{tpu_custom_call.1} parent=1 // loop_exit
      _
    %568 = vsyncpa [#allocation3], 1
    %s569 = scalar_lea.sflag [#allocation3], 1
    %570 = vsyncpa %s569, 1
    %571 = vsyncpa [#allocation6], 1
    %572 = vsyncpa [#allocation9], 1
    %573 = vsyncpa [#allocation4], 1
    %s574 = scalar_lea.sflag [#allocation4], 1
    %575 = vsyncpa %s574, 1

</llo_original>
